<compile_context>
chip_gen: v7x
topology: tpu7x:2x2x1
jax: 0.10.0
libtpu: 0.0.40
codegen_flags: <defaults>
</compile_context>

<pallas_src>
import functools

import jax
import jax.numpy as jnp
from jax.experimental import pallas as pl
from jax.experimental.pallas import tpu as pltpu

LANES = 128
TILE_R_MAX = 4096                    # 4096 x 128 f32 = 2 MiB per input block
VMEM_LIMIT_BYTES = 48 * 1024 * 1024  # ample for 2 inputs x 2 bufs + temporaries; < v7x per-TC physical
_EPS = 1e-07


def _cdiv(a, b):
    return (a + b - 1) // b


def _round_up(x, m):
    return _cdiv(x, m) * m


def _sublane_multiple(dtype):
    # Minimal row-tile multiple for a given dtype: 8 (32-bit), 16 (16-bit), 32 (8-bit).
    bits = jnp.dtype(dtype).itemsize * 8
    return max(8, 256 // bits)


@functools.lru_cache(maxsize=1)
def _detect_num_tensorcores():
    """Best-effort TensorCores per chip: 2 on v7x, 1 on v5e/v6e (and on any failure)."""
    try:
        kind = jax.devices()[0].device_kind.lower()
    except Exception:
        return 1
    return 2 if ("v7" in kind or "7x" in kind) else 1


def _weighted_ce_sum_jnp(p, t, w0, w1):
    """sum(w0*t*log(p) + w1*(1-t)*log(1-p)) in f32 — plain jnp for tiny inputs / <128 tails."""
    p = jnp.clip(p.astype(jnp.float32), _EPS, 1.0 - _EPS)
    t = t.astype(jnp.float32)
    return jnp.sum(w0 * (t * jnp.log(p)) + w1 * ((1.0 - t) * jnp.log(1.0 - p)))


def _ce_kernel(w_ref, p_ref, t_ref, o_ref, acc_ref, *,
               rows, block_r, tiles_per_shard, total_tiles):
    s = pl.program_id(0)            # shard ("parallel")
    i = pl.program_id(1)            # tile within shard ("arbitrary")
    g = s * tiles_per_shard + i     # global tile index

    @pl.when(i == 0)
    def _init():
        acc_ref[...] = jnp.zeros_like(acc_ref)

    # Steady-state elementwise work (inputs stream in native dtype; cast here).
    p = jnp.clip(p_ref[...].astype(jnp.float32), _EPS, 1.0 - _EPS)
    t = t_ref[...].astype(jnp.float32)
    lp = jnp.log(p)
    lq = jnp.log(1.0 - p)
    w0 = w_ref[0]
    w1 = w_ref[1]
    wlq = w1 * lq
    # w0*t*lp + w1*(1-t)*lq  ==  w1*lq + t*(w0*lp - w1*lq)   (fewer VALU ops per vreg)
    contrib = wlq + t * (w0 * lp - wlq)

    def _reduce_to_acc_block(x):
        # (block_r, 128) -> (block_r//8, 8, 128), sum over row-groups: pure vreg adds.
        return x.reshape(block_r // 8, 8, LANES).sum(axis=0)

    full_tiles = rows // block_r   # static: tiles whose rows are all valid

    @pl.when(g < full_tiles)
    def _accumulate_full():
        acc_ref[...] += _reduce_to_acc_block(contrib)

    if full_tiles < total_tiles:
        # Exactly one statically-known partial tile (Pallas-padded rows); mask only it.
        @pl.when(g == full_tiles)
        def _accumulate_partial():
            ridx = jax.lax.broadcasted_iota(jnp.int32, (block_r, LANES), 0)
            valid = (full_tiles * block_r + ridx) < rows
            acc_ref[...] += _reduce_to_acc_block(jnp.where(valid, contrib, 0.0))

    # Tiles with g >= total_tiles (shard imbalance) accumulate nothing.

    @pl.when(i == tiles_per_shard - 1)
    def _finalize():
        o_ref[...] = acc_ref[...]


@functools.partial(jax.jit, static_argnames=("tile_r", "num_shards"))
def improved_ce(prediction, truth, weight, *, tile_r=TILE_R_MAX, num_shards=None):
    """ImprovedCE forward. `weight` is a length-2 array (w0, w1). Returns scalar f32 loss."""
    p_flat = prediction.reshape(-1)
    t_flat = truth.reshape(-1)
    n = p_flat.shape[0]

    w = jnp.asarray(weight, dtype=jnp.float32)
    w0, w1 = w[0], w[1]

    rows = n // LANES            # 128-aligned prefix rows handled by the kernel
    rem = n - rows * LANES       # <128 element tail handled in plain jnp

    if rows < 8:
        # Tiny input: no kernel launch, no padding, no copies.
        total = _weighted_ce_sum_jnp(p_flat, t_flat, w0, w1)
        return -total / jnp.float32(n)

    n_main = rows * LANES
    # When n is a multiple of 128 this is a pure (free) reshape of the whole array;
    # otherwise only the aligned prefix is staged — no full-array jnp.pad copy.
    p2 = p_flat[:n_main].reshape(rows, LANES)    # native dtype all the way into the kernel
    t2 = t_flat[:n_main].reshape(rows, LANES)

    row_align = max(_sublane_multiple(p2.dtype), _sublane_multiple(t2.dtype))
    block_r = _round_up(min(tile_r, rows), row_align)
    total_tiles = _cdiv(rows, block_r)

    ns = num_shards if num_shards is not None else _detect_num_tensorcores()
    ns = max(1, min(int(ns), total_tiles))
    tiles_per_shard = _cdiv(total_tiles, ns)

    kernel = functools.partial(
        _ce_kernel, rows=rows, block_r=block_r,
        tiles_per_shard=tiles_per_shard, total_tiles=total_tiles)

    def _in_map(s_idx, i_idx):
        # Clamp so fully out-of-range tiles (shard imbalance) still read a valid block;
        # the kernel accumulates nothing for them.
        g = s_idx * tiles_per_shard + i_idx
        return (jnp.minimum(g, total_tiles - 1), 0)

    # TODO(synk): if plain "parallel" does not actually split the shard axis across
    # v7x's two TensorCores, switch it to pltpu.CORE_PARALLEL / pl.core_map after
    # verifying lowering on hardware (per-shard init/finalize is already core-local).
    partials = pl.pallas_call(
        kernel,
        out_shape=jax.ShapeDtypeStruct((ns * 8, LANES), jnp.float32),
        grid_spec=pltpu.PrefetchScalarGridSpec(
            num_scalar_prefetch=0,
            grid=(ns, tiles_per_shard),
            in_specs=[
                pl.BlockSpec(memory_space=pltpu.SMEM),      # weight (2,) scalars
                pl.BlockSpec((block_r, LANES), _in_map),    # prediction tiles
                pl.BlockSpec((block_r, LANES), _in_map),    # truth tiles
            ],
            out_specs=pl.BlockSpec((8, LANES), lambda s_idx, i_idx: (s_idx, 0)),
            scratch_shapes=[pltpu.VMEM((8, LANES), jnp.float32)],
        ),
        compiler_params=pltpu.CompilerParams(
            dimension_semantics=("parallel", "arbitrary"),
            vmem_limit_bytes=VMEM_LIMIT_BYTES),
    )(w, p2, t2)

    total = jnp.sum(partials)
    if rem:
        total = total + _weighted_ce_sum_jnp(p_flat[n_main:], t_flat[n_main:], w0, w1)
    return -total / jnp.float32(n)


def _reference(prediction, truth, weight):
    p = jnp.clip(prediction.reshape(-1).astype(jnp.float32), _EPS, 1.0 - _EPS)
    t = truth.reshape(-1).astype(jnp.float32)
    loss = -jnp.sum(weight[0] * (t * jnp.log(p))
                    + weight[1] * ((1.0 - t) * jnp.log(1.0 - p)))
    return loss / t.shape[0]


if __name__ == "__main__":
    key = jax.random.PRNGKey(0)
    ks = jax.random.split(key, 8)

    # Deterministic length-2 "weight" parameter from the module's __init__.
    weight = jnp.array([0.7, 0.3], dtype=jnp.float32)

    def _check(pred, tru, **kw):
        out = jax.block_until_ready(improved_ce(pred, tru, weight, **kw))
        ref = _reference(pred, tru, weight)
        assert jnp.allclose(out, ref, rtol=1e-5, atol=1e-6), (out, ref)

    # 1) Lane-aligned NCHW probabilities + binary truth (single full tile, no copies).
    B, C, H, W = 2, 4, 16, 16
    pred1 = jax.random.uniform(ks[0], (B, C, H, W), dtype=jnp.float32)
    tru1 = (jax.random.uniform(ks[1], (B, C, H, W)) > 0.5).astype(jnp.float32)
    _check(pred1, tru1)

    # 2) Tiny non-128-aligned input -> pure-jnp path (no kernel, no padding).
    shape2 = (2, 3, 7, 11)                                    # 462 elements
    pred2 = jax.random.uniform(ks[2], shape2, dtype=jnp.float32)
    tru2 = (jax.random.uniform(ks[3], shape2) > 0.5).astype(jnp.float32)
    _check(pred2, tru2)

    # 3) Non-aligned, larger: kernel over the 128-aligned prefix with a masked partial
    #    tile (rows=19, not a multiple of 8) + plain-jnp tail of 38 elements.
    shape3 = (2, 5, 13, 19)                                   # 2470 elements
    pred3 = jax.random.uniform(ks[4], shape3, dtype=jnp.float32)
    tru3 = (jax.random.uniform(ks[5], shape3) > 0.5).astype(jnp.float32)
    _check(pred3, tru3)

    # 4) bf16 prediction streamed in native dtype; small forced tile + 2 shards to
    #    exercise multi-tile accumulation, per-shard init/finalize and the shard reduce.
    shape4 = (2, 4, 16, 32)                                   # 4096 elements -> 32 rows
    pred4 = jax.random.uniform(ks[6], shape4, dtype=jnp.float32).astype(jnp.bfloat16)
    tru4 = (jax.random.uniform(ks[7], shape4) > 0.5).astype(jnp.float32)
    _check(pred4, tru4, tile_r=16, num_shards=2)

    print("KERNEL_OK")
</pallas_src>

<mosaic_0001>
module attributes {stable_mosaic.version = 11 : i64} {
  func.func @_ce_kernel(%arg0: i32, %arg1: i32, %arg2: memref<2xf32, #tpu.memory_space<smem>>, %arg3: memref<16x128xf32, #tpu.memory_space<vmem>>, %arg4: memref<16x128xf32, #tpu.memory_space<vmem>>, %arg5: memref<8x128xf32, #tpu.memory_space<vmem>>, %arg6: memref<8x128xf32, #tpu.memory_space<vmem>>) attributes {dimension_semantics = [#tpu.dimension_semantics<parallel>, #tpu.dimension_semantics<arbitrary>], iteration_bounds = array<i64: 1, 1>, scalar_prefetch = 0 : i64, scratch_operands = 1 : i64, tpu.core_type = #tpu.core_type<tc>, window_params = [{transform_indices = @transform_0, window_bounds = array<i64: 2>}, {transform_indices = @transform_1, window_bounds = array<i64: 16, 128>}, {transform_indices = @transform_2, window_bounds = array<i64: 16, 128>}, {transform_indices = @transform_3, window_bounds = array<i64: 8, 128>}]} {
    %c1_i32 = arith.constant 1 : i32
    %0 = arith.muli %arg0, %c1_i32 : i32
    %1 = arith.addi %0, %arg1 : i32
    %c0_i32 = arith.constant 0 : i32
    %2 = arith.cmpi eq, %arg1, %c0_i32 : i32
    %3 = arith.extui %2 : i1 to i32
    %c0_i32_0 = arith.constant 0 : i32
    %4 = arith.cmpi ne, %3, %c0_i32_0 : i32
    scf.if %4 {
      %cst_11 = arith.constant 0.000000e+00 : f32
      %30 = vector.broadcast %cst_11 : f32 to vector<8x128xf32>
      %c0_12 = arith.constant 0 : index
      %c0_13 = arith.constant 0 : index
      %31 = vector.load %arg6[%c0_12, %c0_13] : memref<8x128xf32, #tpu.memory_space<vmem>>, vector<8x128xf32>
      tpu.vector_store %arg6[%c0_12, %c0_13], %30 {strides = array<i32>} : memref<8x128xf32, #tpu.memory_space<vmem>>, vector<8x128xf32>,
    } else {
    }
    %c0 = arith.constant 0 : index
    %c0_1 = arith.constant 0 : index
    %5 = vector.load %arg3[%c0, %c0_1] : memref<16x128xf32, #tpu.memory_space<vmem>>, vector<16x128xf32>
    %cst = arith.constant 1.000000e-07 : f32
    %cst_2 = arith.constant 0.99999988 : f32
    %6 = vector.broadcast %cst : f32 to vector<16x128xf32>
    %7 = arith.maximumf %6, %5 : vector<16x128xf32>
    %8 = vector.broadcast %cst_2 : f32 to vector<16x128xf32>
    %9 = arith.minimumf %8, %7 : vector<16x128xf32>
    %c0_3 = arith.constant 0 : index
    %c0_4 = arith.constant 0 : index
    %10 = vector.load %arg4[%c0_3, %c0_4] : memref<16x128xf32, #tpu.memory_space<vmem>>, vector<16x128xf32>
    %11 = math.log %9 : vector<16x128xf32>
    %cst_5 = arith.constant 1.000000e+00 : f32
    %12 = vector.broadcast %cst_5 : f32 to vector<16x128xf32>
    %13 = arith.subf %12, %9 : vector<16x128xf32>
    %14 = math.log %13 : vector<16x128xf32>
    %c0_6 = arith.constant 0 : index
    %15 = memref.load %arg2[%c0_6] : memref<2xf32, #tpu.memory_space<smem>>
    %c1 = arith.constant 1 : index
    %16 = memref.load %arg2[%c1] : memref<2xf32, #tpu.memory_space<smem>>
    %17 = vector.broadcast %16 : f32 to vector<16x128xf32>
    %18 = arith.mulf %17, %14 : vector<16x128xf32>
    %19 = vector.broadcast %15 : f32 to vector<16x128xf32>
    %20 = arith.mulf %19, %11 : vector<16x128xf32>
    %21 = arith.subf %20, %18 : vector<16x128xf32>
    %22 = arith.mulf %10, %21 : vector<16x128xf32>
    %23 = arith.addf %18, %22 : vector<16x128xf32>
    %c1_i32_7 = arith.constant 1 : i32
    %24 = arith.cmpi slt, %1, %c1_i32_7 : i32
    %25 = arith.extui %24 : i1 to i32
    %c0_i32_8 = arith.constant 0 : i32
    %26 = arith.cmpi ne, %25, %c0_i32_8 : i32
    scf.if %26 {
      %c0_11 = arith.constant 0 : index
      %c0_12 = arith.constant 0 : index
      %30 = vector.load %arg6[%c0_11, %c0_12] : memref<8x128xf32, #tpu.memory_space<vmem>>, vector<8x128xf32>
      %31 = vector.shape_cast %23 : vector<16x128xf32> to vector<2x8x128xf32>
      %cst_13 = arith.constant dense<0.000000e+00> : vector<8x128xf32>
      %32 = vector.multi_reduction <add>, %31, %cst_13 [0] : vector<2x8x128xf32> to vector<8x128xf32>
      %33 = arith.addf %30, %32 : vector<8x128xf32>
      %c0_14 = arith.constant 0 : index
      %c0_15 = arith.constant 0 : index
      %34 = vector.load %arg6[%c0_14, %c0_15] : memref<8x128xf32, #tpu.memory_space<vmem>>, vector<8x128xf32>
      tpu.vector_store %arg6[%c0_14, %c0_15], %33 {strides = array<i32>} : memref<8x128xf32, #tpu.memory_space<vmem>>, vector<8x128xf32>,
    } else {
    }
    %c0_i32_9 = arith.constant 0 : i32
    %27 = arith.cmpi eq, %arg1, %c0_i32_9 : i32
    %28 = arith.extui %27 : i1 to i32
    %c0_i32_10 = arith.constant 0 : i32
    %29 = arith.cmpi ne, %28, %c0_i32_10 : i32
    scf.if %29 {
      %c0_11 = arith.constant 0 : index
      %c0_12 = arith.constant 0 : index
      %30 = vector.load %arg6[%c0_11, %c0_12] : memref<8x128xf32, #tpu.memory_space<vmem>>, vector<8x128xf32>
      %c0_13 = arith.constant 0 : index
      %c0_14 = arith.constant 0 : index
      %31 = vector.load %arg5[%c0_13, %c0_14] : memref<8x128xf32, #tpu.memory_space<vmem>>, vector<8x128xf32>
      tpu.vector_store %arg5[%c0_13, %c0_14], %30 {strides = array<i32>} : memref<8x128xf32, #tpu.memory_space<vmem>>, vector<8x128xf32>,
    } else {
    }
    return
  }
  func.func @transform_0(%arg0: i32, %arg1: i32) -> i32 {
    %c0_i32 = arith.constant 0 : i32
    %c0_i32_0 = arith.constant 0 : i32
    return %c0_i32 : i32
  }
  func.func @transform_1(%arg0: i32, %arg1: i32) -> (i32, i32) {
    %c1_i32 = arith.constant 1 : i32
    %0 = arith.muli %arg0, %c1_i32 : i32
    %1 = arith.addi %0, %arg1 : i32
    %c0_i32 = arith.constant 0 : i32
    %2 = arith.minsi %1, %c0_i32 : i32
    %c0_i32_0 = arith.constant 0 : i32
    %c0_i32_1 = arith.constant 0 : i32
    return %2, %c0_i32_0 : i32, i32
  }
  func.func @transform_2(%arg0: i32, %arg1: i32) -> (i32, i32) {
    %c1_i32 = arith.constant 1 : i32
    %0 = arith.muli %arg0, %c1_i32 : i32
    %1 = arith.addi %0, %arg1 : i32
    %c0_i32 = arith.constant 0 : i32
    %2 = arith.minsi %1, %c0_i32 : i32
    %c0_i32_0 = arith.constant 0 : i32
    %c0_i32_1 = arith.constant 0 : i32
    return %2, %c0_i32_0 : i32, i32
  }
  func.func @transform_3(%arg0: i32, %arg1: i32) -> (i32, i32) {
    %c0_i32 = arith.constant 0 : i32
    %c0_i32_0 = arith.constant 0 : i32
    return %arg0, %c0_i32 : i32, i32
  }
}

</mosaic_0001>

<llo_original>
// kernel: improved_ce.1
$region0: #{improved_ce.1}
  #allocation0 [shape = 'u32[]', space=smem, size = 0x4, offset = 0x4, fixed_abs, tag = 'smem constant byte address 0x4 - core index']
  #allocation1 [shape = 'u32[144,128]{1,0:T(1,128)}', space=vmem, size = 0x12000, scoped, tag = 'internal scratch']
  #allocation2 [shape = 'f32[8,128]{1,0:T(8,128)}', space=vmem, size = 0x1000, scoped, tag = 'scratch operand']
  %s0 = inlined_call_operand.vmem [shape: f32[2], index: 0, kind: input, shape index: {}]
  %s1 = inlined_call_operand.vmem [shape: f32[16,128], index: 1, kind: input, shape index: {}]
  %s2 = inlined_call_operand.vmem [shape: f32[16,128], index: 2, kind: input, shape index: {}]
  %s3 = inlined_call_operand.vmem [shape: f32[8,128], index: 3, kind: output, shape index: {}]
  %s4 = sld [smem:[#allocation0]]
  $region38: #{improved_ce.1} parent=0
    _
  %s6 = ssub.s32 1, %s4
  %s7 = scalar_select 0, %s6, %s4
  $region1: #{improved_ce.1} parent=0
    #allocation3 [shape = 'u8[512]{0}', space=smem, size = 0x200, scoped, tag = 'input window, operand 0, single buffered']
    #allocation4 [shape = 's32[1]{0}', space=sflag, size = 0x4, scoped, tag = 'scoped memory for improved_ce.1']
    %8 = vsyncpa [#allocation4], 0
    // Predicated region
    $region2: #{improved_ce.1} parent=1 // pred_check
      _
    $region3: #{improved_ce.1} parent=1 // pred_check_branch
      %10 = sbr.rel (0) target = $region5
    $region4: #{improved_ce.1} parent=1 // pred_region
      %s12 = ssub.s32 16, 16
      %13 = vsyncadd [#allocation4], %s12
      %s15 = sshll.u32 %s0, 4
      %s16 = int_to_ptr.vmem [resolvable:$true] %s15
      %18 = dma.vmem_to_smem %s16, 16, [#allocation3], [#allocation4]
    $region5: #{improved_ce.1} parent=1 // pred_fallthru
      _
    // Predicated region
    $region6: #{improved_ce.1} parent=1 // pred_check
      _
    $region7: #{improved_ce.1} parent=1 // pred_check_branch
      %20 = sbr.rel (0) target = $region9
    $region8: #{improved_ce.1} parent=1 // pred_region
      %s21 = sadd.s32 0, 0
      %p22 = scmp.lt.s32.totalorder %s21, 0
      %s23 = scalar_select %p22, %s21, 0
      %s24 = smul.u32 2, %s23
      %p25 = scmp.lt.s32.totalorder %s24, 1
      %s26 = scalar_select %p25, %s24, 1
      %s27 = smul.addr %s26, 8
      %s28 = scalar_lea.vmem %s1, %s27
      %s29 = sadd.s32 0, 0
      %p30 = scmp.lt.s32.totalorder %s29, 0
      %s31 = scalar_select %p30, %s29, 0
      %s32 = smul.u32 2, %s31
    $region9: #{improved_ce.1} parent=1 // pred_fallthru
      _
    // Predicated region
    $region10: #{improved_ce.1} parent=1 // pred_check
      _
    $region11: #{improved_ce.1} parent=1 // pred_check_branch
      %34 = sbr.rel (0) target = $region13
    $region12: #{improved_ce.1} parent=1 // pred_region
      %s35 = sadd.s32 0, 0
      %p36 = scmp.lt.s32.totalorder %s35, 0
      %s37 = scalar_select %p36, %s35, 0
      %s38 = smul.u32 2, %s37
      %p39 = scmp.lt.s32.totalorder %s38, 1
      %s40 = scalar_select %p39, %s38, 1
      %s41 = smul.addr %s40, 8
      %s42 = scalar_lea.vmem %s2, %s41
      %s43 = sadd.s32 0, 0
      %p44 = scmp.lt.s32.totalorder %s43, 0
      %s45 = scalar_select %p44, %s43, 0
      %s46 = smul.u32 2, %s45
    $region13: #{improved_ce.1} parent=1 // pred_fallthru
      _
    // Predicated region
    $region14: #{improved_ce.1} parent=1 // pred_check
      _
    $region15: #{improved_ce.1} parent=1 // pred_check_branch
      %48 = sbr.rel (0) target = $region17
    $region16: #{improved_ce.1} parent=1 // pred_region
      %49 = dma.done [#allocation4], 16
    $region17: #{improved_ce.1} parent=1 // pred_fallthru
      _
    %50 = sfence
    %s51 = sadd.s32 0, 0
    %p52 = scmp.lt.s32.totalorder %s51, 0
    %s53 = scalar_select %p52, %s51, 0
    %s54 = smul.u32 2, %s53
    %p55 = scmp.lt.s32.totalorder %s54, 1
    %s56 = scalar_select %p55, %s54, 1
    %s57 = smul.addr %s56, 8
    %s58 = scalar_lea.vmem %s1, %s57
    %s59 = sadd.s32 0, 0
    %p60 = scmp.lt.s32.totalorder %s59, 0
    %s61 = scalar_select %p60, %s59, 0
    %s62 = smul.u32 2, %s61
    %p63 = scmp.lt.s32.totalorder %s62, 1
    %s64 = scalar_select %p63, %s62, 1
    %s65 = smul.addr %s64, 8
    %s66 = scalar_lea.vmem %s2, %s65
    %s67 = sadd.s32 0, 0
    %p68 = scmp.lt.s32.totalorder %s67, 0
    %s69 = scalar_select %p68, %s67, 0
    %s70 = smul.u32 2, %s69
    %p71 = scmp.lt.s32.totalorder %s70, 1
    %s72 = scalar_select %p71, %s70, 1
    %s73 = smul.addr %s72, 8
    %s74 = scalar_lea.vmem %s1, %s73
    %s75 = sadd.s32 0, 0
    %p76 = scmp.lt.s32.totalorder %s75, 0
    %s77 = scalar_select %p76, %s75, 0
    %s78 = smul.u32 2, %s77
    %s79 = sadd.s32 0, 0
    %p80 = scmp.lt.s32.totalorder %s79, 0
    %s81 = scalar_select %p80, %s79, 0
    %s82 = smul.u32 2, %s81
    %p83 = scmp.lt.s32.totalorder %s82, 1
    %s84 = scalar_select %p83, %s82, 1
    %s85 = smul.addr %s84, 8
    %s86 = scalar_lea.vmem %s2, %s85
    %s87 = sadd.s32 0, 0
    %p88 = scmp.lt.s32.totalorder %s87, 0
    %s89 = scalar_select %p88, %s87, 0
    %s90 = smul.u32 2, %s89
    %s91 = sadd.s32 0, 0
    %p92 = scmp.eq.s32.totalorder 0, 0
    // Predicated region
    $region18: #{improved_ce.1} parent=1 // pred_check
      %p93 = pneg %p92
    $region19: #{improved_ce.1} parent=1 // pred_check_branch
      %95 = sbr.rel (%p93) target = $region21
    $region20: #{improved_ce.1} parent=1 // pred_region
      %96 = vst [vmem:[#allocation2] sm:$0xff] 0.0
    $region21: #{improved_ce.1} parent=1 // pred_fallthru
      _
    %v97 = vld [vmem:[%s74] sm:$0xff]
    %v98 = vld [vmem:[%s74 + $0x8] sm:$0xff]
    %v99 = vmax.f32 %v97, 1e-07
    %v100 = vmax.f32 %v98, 1e-07
    %v101 = vmin.f32 %v99, 0.9999999
    %v102 = vmin.f32 %v100, 0.9999999
    %v103 = vld [vmem:[%s86] sm:$0xff]
    %v104 = vld [vmem:[%s86 + $0x8] sm:$0xff]
    %v105 = vlog2.pop %v101
    %v106 = vmul.f32 %v105, 0.6931472
    %v107 = vlog2.pop %v102
    %v108 = vmul.f32 %v107, 0.6931472
    %v109 = vsub.f32 1.0, %v101
    %v110 = vsub.f32 1.0, %v102
    %v111 = vlog2.pop %v109
    %v112 = vmul.f32 %v111, 0.6931472
    %v113 = vlog2.pop %v110
    %v114 = vmul.f32 %v113, 0.6931472
    %s115 = sld [smem:[#allocation3]]
    %s116 = sld [smem:[#allocation3 + $0x1]]
    %v117 = vstv %s116
    %v118 = vmul.f32 %v117, %v112
    %v119 = vmul.f32 %v117, %v114
    %v120 = vstv %s115
    %v121 = vmul.f32 %v120, %v106
    %v122 = vmul.f32 %v120, %v108
    %v123 = vsub.f32 %v121, %v118
    %v124 = vsub.f32 %v122, %v119
    %v125 = vmul.f32 %v103, %v123
    %v126 = vmul.f32 %v104, %v124
    %v127 = vadd.f32 %v118, %v125
    %v128 = vadd.f32 %v119, %v126
    %p129 = scmp.lt.s32.totalorder %s91, 1
    // Predicated region
    $region22: #{improved_ce.1} parent=1 // pred_check
      %p130 = pneg %p129
    $region23: #{improved_ce.1} parent=1 // pred_check_branch
      %132 = sbr.rel (%p130) target = $region25
    $region24: #{improved_ce.1} parent=1 // pred_region
      %v133 = vld [vmem:[#allocation2] sm:$0xff]
      %v134 = vadd.f32 %v127, %v128
      %v135 = vadd.f32 %v133, %v134
      %136 = vst [vmem:[#allocation2] sm:$0xff] %v135
    $region25: #{improved_ce.1} parent=1 // pred_fallthru
      _
    // Predicated region
    $region26: #{improved_ce.1} parent=1 // pred_check
      %p137 = pneg %p92
    $region27: #{improved_ce.1} parent=1 // pred_check_branch
      %139 = sbr.rel (%p137) target = $region29
    $region28: #{improved_ce.1} parent=1 // pred_region
      %v140 = vld [vmem:[#allocation2] sm:$0xff]
      %141 = vst [vmem:[%s3] sm:$0xff] %v140
    $region29: #{improved_ce.1} parent=1 // pred_fallthru
      _
    // Predicated region
    $region30: #{improved_ce.1} parent=1 // pred_check
      _
    $region31: #{improved_ce.1} parent=1 // pred_check_branch
      %143 = sbr.rel (0) target = $region33
    $region32: #{improved_ce.1} parent=1 // pred_region
      _
    $region33: #{improved_ce.1} parent=1 // pred_fallthru
      _
    // Predicated region
    $region34: #{improved_ce.1} parent=1 // pred_check
      _
    $region35: #{improved_ce.1} parent=1 // pred_check_branch
      %145 = sbr.rel (0) target = $region37
    $region36: #{improved_ce.1} parent=1 // pred_region
      _
    $region37: #{improved_ce.1} parent=1 // pred_fallthru
      _
    %146 = vsyncpa [#allocation4], 1

</llo_original>
